<compile_context>
chip_gen: v6e
topology: v6e:2x2x1
jax: 0.10.0
libtpu: 0.0.40
codegen_flags: <defaults>
</compile_context>

<pallas_src>
import functools

import jax
import jax.numpy as jnp
from jax.experimental import pallas as pl
from jax.experimental.pallas import tpu as pltpu


# ---------------------------------------------------------------------------
# Fused Pallas kernel: shifted-tap conv (MXU) + bias + ReLU + masked global
# average pool + FC head, one whole image per grid step.
# ---------------------------------------------------------------------------
def fused_conv_pool_fc_kernel(x_ref, wc_ref, bc_ref, mask_ref, wf_ref, bf_ref,
                              o_ref, *, c_in, l_valid, tap_offsets, k_pad):
    """Grid = (N,).

    x_ref:    [1, C_in, L_ext] bf16  zero-padded, flattened image (+ tail pad)
    wc_ref:   [C_out, K_pad]   bf16  conv weight, K ordered as (tap, ci)
    bc_ref:   [C_out, 1]       f32   conv bias
    mask_ref: [1, L]           f32   1/(H*W) on valid output pixels, else 0
    wf_ref:   [C_out, OUT_pad] f32   fc weight (transposed, lane-padded)
    bf_ref:   [1, OUT_pad]     f32   fc bias (lane-padded)
    o_ref:    [1, 1, OUT_pad]  f32   output row for this image
    """
    x_img = x_ref[0]                                       # [C_in, L_ext] bf16

    # Build patches^T directly in VMEM: 9 statically shifted views of the
    # flattened image (1 lane-offset slice per tap), channels stacked on
    # sublanes, spatial positions on lanes.  No HBM im2col.
    pieces = [x_img[:, off:off + l_valid] for off in tap_offsets]
    n_rows = len(tap_offsets) * c_in
    if k_pad > n_rows:
        pieces.append(jnp.zeros((k_pad - n_rows, l_valid), dtype=x_img.dtype))
    patches_t = jnp.concatenate(pieces, axis=0)            # [K_pad, L] bf16

    # Conv as a single MXU matmul with C_out on sublanes (no 128-lane padding).
    conv = jnp.dot(wc_ref[...], patches_t,
                   preferred_element_type=jnp.float32)     # [C_out, L] f32
    act = jnp.maximum(conv + bc_ref[...], 0.0)             # bias + ReLU

    # Masked global average pool: mask zeroes the spatial-pad columns and
    # already carries the 1/(H*W) scale, so padded positions cannot leak in.
    pooled = jnp.sum(act * mask_ref[...], axis=1, keepdims=True)  # [C_out, 1]

    # FC head on the VPU (broadcast-mul + sublane reduce); lane-dense store.
    out = jnp.sum(wf_ref[...] * pooled, axis=0, keepdims=True) + bf_ref[...]
    o_ref[0] = out                                         # [1, OUT_pad]


# ---------------------------------------------------------------------------
# Wrapper-side glue
# ---------------------------------------------------------------------------
def _round_up(x, m):
    return ((x + m - 1) // m) * m


def pack_params(params):
    """Convert PyTorch-layout params to kernel-ready operands.

    Channels are padded only to 8 sublanes (not 128 lanes); K = 9*C_in is
    padded to a multiple of 8; only the tiny FC output is lane-padded to 128.
    """
    w_conv_pt = params["w_conv"]                  # [C_out, C_in, 3, 3]
    b_conv = params["b_conv"]                     # [C_out]
    w_fc_pt = params["w_fc"]                      # [n_out, C_out] (torch Linear)
    b_fc = params["b_fc"]                         # [n_out]

    c_out, c_in, kh, kw = w_conv_pt.shape
    n_out = w_fc_pt.shape[0]
    k_raw = kh * kw * c_in
    k_pad = _round_up(k_raw, 8)                   # 27 -> 32
    c_pad = _round_up(c_out, 8)                   # 16 stays 16 (sublane pad only)
    out_pad = _round_up(max(n_out, 128), 128)     # lane-dense output row

    # [C_out, C_in, KH, KW] -> [C_out, KH, KW, C_in] -> [C_out, 9*C_in]
    # so K is ordered (tap = di*3+dj, ci), matching the kernel's tap stacking.
    wc = jnp.transpose(w_conv_pt, (0, 2, 3, 1)).reshape(c_out, k_raw)
    wc = jnp.pad(wc, ((0, c_pad - c_out), (0, k_pad - k_raw))).astype(jnp.bfloat16)
    bc = jnp.pad(b_conv[:, None], ((0, c_pad - c_out), (0, 0))).astype(jnp.float32)
    wf = jnp.pad(w_fc_pt.T, ((0, c_pad - c_out), (0, out_pad - n_out))).astype(jnp.float32)
    bf = jnp.pad(b_fc[None, :], ((0, 0), (0, out_pad - n_out))).astype(jnp.float32)
    return {"w_conv": wc, "b_conv": bc, "w_fc": wf, "b_fc": bf}


def pilotnet_surrogate_forward(x_nchw, packed, n_out):
    """Forward of the (surrogate) base model wrapped by OutputSelector."""
    n, c_in, h, w = x_nchw.shape
    hp, wp = h + 2, w + 2                          # SAME-conv halo
    l_valid = hp * wp                              # flattened padded image
    max_off = 2 * wp + 2                           # largest tap offset
    l_ext = l_valid + max_off                      # tail pad so slices stay in range

    wc, bc, wf, bf = (packed["w_conv"], packed["b_conv"],
                      packed["w_fc"], packed["b_fc"])
    c_pad, k_pad = wc.shape
    out_pad = wf.shape[1]

    # Single fused pass over x: spatial zero-pad, flatten rows, bf16 cast,
    # tail zero-pad.  This is the ONLY per-pixel HBM stream the kernel reads.
    xp = jnp.pad(x_nchw, ((0, 0), (0, 0), (1, 1), (1, 1)))
    x_flat = xp.reshape(n, c_in, l_valid)
    x_flat = jnp.pad(x_flat, ((0, 0), (0, 0), (0, max_off))).astype(jnp.bfloat16)

    # Pool mask: 1/(H*W) at valid output pixels, 0 on the pad rows/cols.
    m_idx = jnp.arange(l_valid, dtype=jnp.int32)
    valid = ((m_idx // wp) < h) & ((m_idx % wp) < w)
    mask = jnp.where(valid, 1.0 / (h * w), 0.0).astype(jnp.float32)[None, :]

    tap_offsets = tuple(di * wp + dj for di in range(3) for dj in range(3))

    kernel = functools.partial(
        fused_conv_pool_fc_kernel,
        c_in=c_in, l_valid=l_valid, tap_offsets=tap_offsets, k_pad=k_pad)

    flops = 2 * n * l_valid * k_pad * c_pad + 2 * n * c_pad * out_pad
    bytes_accessed = (x_flat.size * 2 + wc.size * 2 + mask.size * 4
                      + bc.size * 4 + wf.size * 4 + bf.size * 4
                      + n * out_pad * 4)

    out = pl.pallas_call(
        kernel,
        out_shape=jax.ShapeDtypeStruct((n, 1, out_pad), jnp.float32),
        grid_spec=pltpu.PrefetchScalarGridSpec(
            num_scalar_prefetch=0,
            grid=(n,),
            in_specs=[
                pl.BlockSpec((1, c_in, l_ext), lambda b: (b, 0, 0)),   # x
                pl.BlockSpec((c_pad, k_pad), lambda b: (0, 0)),        # w_conv
                pl.BlockSpec((c_pad, 1), lambda b: (0, 0)),            # b_conv
                pl.BlockSpec((1, l_valid), lambda b: (0, 0)),          # pool mask
                pl.BlockSpec((c_pad, out_pad), lambda b: (0, 0)),      # w_fc
                pl.BlockSpec((1, out_pad), lambda b: (0, 0)),          # b_fc
            ],
            out_specs=pl.BlockSpec((1, 1, out_pad), lambda b: (b, 0, 0)),
        ),
        compiler_params=pltpu.CompilerParams(
            dimension_semantics=("parallel",),
            vmem_limit_bytes=32 * 1024 * 1024,
        ),
        cost_estimate=pl.CostEstimate(
            flops=flops, transcendentals=0, bytes_accessed=bytes_accessed),
    )(x_flat, wc, bc, mask, wf, bf)

    return out[:, 0, :n_out]                                 # [N, n_out]


def output_selector_forward(x_nchw, packed, n_out=1):
    """OutputSelector.forward: pure pass-through to the wrapped model."""
    return pilotnet_surrogate_forward(x_nchw, packed, n_out)


# ---------------------------------------------------------------------------
# Pure-JAX reference (PyTorch semantics) for correctness checking
# ---------------------------------------------------------------------------
def reference_forward(x_nchw, params):
    conv = jax.lax.conv_general_dilated(
        x_nchw, params["w_conv"], window_strides=(1, 1), padding="SAME",
        dimension_numbers=("NCHW", "OIHW", "NCHW"))
    act = jnp.maximum(conv + params["b_conv"][None, :, None, None], 0.0)
    pooled = act.mean(axis=(2, 3))                           # [N, C_out]
    return pooled @ params["w_fc"].T + params["b_fc"][None, :]


# ---------------------------------------------------------------------------
# Deterministic parameter init (PyTorch layouts) + demo
# ---------------------------------------------------------------------------
def init_params(key, c_in=3, c_out=16, n_out=1):
    k1, k2, k3, k4 = jax.random.split(key, 4)
    return {
        "w_conv": 0.1 * jax.random.normal(k1, (c_out, c_in, 3, 3), jnp.float32),
        "b_conv": 0.01 * jax.random.normal(k2, (c_out,), jnp.float32),
        "w_fc": 0.1 * jax.random.normal(k3, (n_out, c_out), jnp.float32),
        "b_fc": 0.01 * jax.random.normal(k4, (n_out,), jnp.float32),
    }


if __name__ == "__main__":
    key = jax.random.PRNGKey(0)
    k_params, k_x = jax.random.split(key)

    # use_rgb=True -> 3-channel NCHW input
    x = jax.random.normal(k_x, (2, 3, 16, 16), jnp.float32)
    params = init_params(k_params, c_in=3, c_out=16, n_out=1)
    packed = pack_params(params)

    y = output_selector_forward(x, packed, n_out=1)
    jax.block_until_ready(y)

    y_ref = reference_forward(x, params)
    assert y.shape == (2, 1) and y.dtype == jnp.float32
    assert jnp.allclose(y, y_ref, atol=1e-2, rtol=1e-2), (y, y_ref)
    print("KERNEL_OK")
</pallas_src>

<mosaic_0001>
module attributes {stable_mosaic.version = 11 : i64} {
  func.func @fused_conv_pool_fc_kernel(%arg0: i32, %arg1: memref<1x3x362xbf16, #tpu.memory_space<vmem>>, %arg2: memref<16x32xbf16, #tpu.memory_space<vmem>>, %arg3: memref<16x1xf32, #tpu.memory_space<vmem>>, %arg4: memref<1x324xf32, #tpu.memory_space<vmem>>, %arg5: memref<16x128xf32, #tpu.memory_space<vmem>>, %arg6: memref<1x128xf32, #tpu.memory_space<vmem>>, %arg7: memref<1x1x128xf32, #tpu.memory_space<vmem>>) attributes {dimension_semantics = [#tpu.dimension_semantics<parallel>], iteration_bounds = array<i64: 2>, scalar_prefetch = 0 : i64, scratch_operands = 0 : i64, tpu.core_type = #tpu.core_type<tc>, window_params = [{transform_indices = @transform_0, window_bounds = array<i64: 1, 3, 362>}, {pipeline_mode = #tpu.pipeline_mode<synchronous>, transform_indices = @transform_1, window_bounds = array<i64: 16, 32>}, {pipeline_mode = #tpu.pipeline_mode<synchronous>, transform_indices = @transform_2, window_bounds = array<i64: 16, 1>}, {pipeline_mode = #tpu.pipeline_mode<synchronous>, transform_indices = @transform_3, window_bounds = array<i64: 1, 324>}, {pipeline_mode = #tpu.pipeline_mode<synchronous>, transform_indices = @transform_4, window_bounds = array<i64: 16, 128>}, {pipeline_mode = #tpu.pipeline_mode<synchronous>, transform_indices = @transform_5, window_bounds = array<i64: 1, 128>}, {transform_indices = @transform_6, window_bounds = array<i64: 1, 1, 128>}]} {
    %c0 = arith.constant 0 : index
    %c0_0 = arith.constant 0 : index
    %c0_1 = arith.constant 0 : index
    %0 = vector.load %arg1[%c0, %c0_0, %c0_1] : memref<1x3x362xbf16, #tpu.memory_space<vmem>>, vector<1x3x362xbf16>
    %1 = vector.shape_cast %0 : vector<1x3x362xbf16> to vector<3x362xbf16>
    %2 = vector.extract_strided_slice %1 {offsets = [0, 0], sizes = [3, 324], strides = [1, 1]} : vector<3x362xbf16> to vector<3x324xbf16>
    %3 = vector.extract_strided_slice %1 {offsets = [0, 1], sizes = [3, 324], strides = [1, 1]} : vector<3x362xbf16> to vector<3x324xbf16>
    %4 = vector.extract_strided_slice %1 {offsets = [0, 2], sizes = [3, 324], strides = [1, 1]} : vector<3x362xbf16> to vector<3x324xbf16>
    %5 = vector.extract_strided_slice %1 {offsets = [0, 18], sizes = [3, 324], strides = [1, 1]} : vector<3x362xbf16> to vector<3x324xbf16>
    %6 = vector.extract_strided_slice %1 {offsets = [0, 19], sizes = [3, 324], strides = [1, 1]} : vector<3x362xbf16> to vector<3x324xbf16>
    %7 = vector.extract_strided_slice %1 {offsets = [0, 20], sizes = [3, 324], strides = [1, 1]} : vector<3x362xbf16> to vector<3x324xbf16>
    %8 = vector.extract_strided_slice %1 {offsets = [0, 36], sizes = [3, 324], strides = [1, 1]} : vector<3x362xbf16> to vector<3x324xbf16>
    %9 = vector.extract_strided_slice %1 {offsets = [0, 37], sizes = [3, 324], strides = [1, 1]} : vector<3x362xbf16> to vector<3x324xbf16>
    %10 = vector.extract_strided_slice %1 {offsets = [0, 38], sizes = [3, 324], strides = [1, 1]} : vector<3x362xbf16> to vector<3x324xbf16>
    %cst = arith.constant 0.000000e+00 : bf16
    %11 = vector.broadcast %cst : bf16 to vector<5x324xbf16>
    %12 = tpu.concatenate %2, %3, %4, %5, %6, %7, %8, %9, %10, %11 in 0 : vector<3x324xbf16>, vector<3x324xbf16>, vector<3x324xbf16>, vector<3x324xbf16>, vector<3x324xbf16>, vector<3x324xbf16>, vector<3x324xbf16>, vector<3x324xbf16>, vector<3x324xbf16>, vector<5x324xbf16> -> vector<32x324xbf16>
    %c0_2 = arith.constant 0 : index
    %c0_3 = arith.constant 0 : index
    %13 = vector.load %arg2[%c0_2, %c0_3] : memref<16x32xbf16, #tpu.memory_space<vmem>>, vector<16x32xbf16>
    %cst_4 = arith.constant dense<0.000000e+00> : vector<16x324xf32>
    %14 = tpu.matmul %13, %12, %cst_4 {dimension_numbers = #tpu.dot_dimension_numbers<[1], [0], [0], [1], [0, 0, 1, 1], [], []>} : vector<16x32xbf16>, vector<32x324xbf16>, vector<16x324xf32> -> vector<16x324xf32>
    %c0_5 = arith.constant 0 : index
    %c0_6 = arith.constant 0 : index
    %15 = vector.load %arg3[%c0_5, %c0_6] : memref<16x1xf32, #tpu.memory_space<vmem>>, vector<16x1xf32>
    %16 = vector.broadcast %15 : vector<16x1xf32> to vector<16x324xf32>
    %17 = arith.addf %14, %16 : vector<16x324xf32>
    %cst_7 = arith.constant 0.000000e+00 : f32
    %18 = vector.broadcast %cst_7 : f32 to vector<16x324xf32>
    %19 = arith.maximumf %17, %18 : vector<16x324xf32>
    %c0_8 = arith.constant 0 : index
    %c0_9 = arith.constant 0 : index
    %20 = vector.load %arg4[%c0_8, %c0_9] : memref<1x324xf32, #tpu.memory_space<vmem>>, vector<1x324xf32>
    %21 = vector.broadcast %20 : vector<1x324xf32> to vector<16x324xf32>
    %22 = arith.mulf %19, %21 : vector<16x324xf32>
    %cst_10 = arith.constant dense<0.000000e+00> : vector<16xf32>
    %23 = vector.multi_reduction <add>, %22, %cst_10 [1] : vector<16x324xf32> to vector<16xf32>
    %24 = vector.shape_cast %23 : vector<16xf32> to vector<16x1xf32>
    %c0_11 = arith.constant 0 : index
    %c0_12 = arith.constant 0 : index
    %25 = vector.load %arg5[%c0_11, %c0_12] : memref<16x128xf32, #tpu.memory_space<vmem>>, vector<16x128xf32>
    %26 = vector.broadcast %24 : vector<16x1xf32> to vector<16x128xf32>
    %27 = arith.mulf %25, %26 : vector<16x128xf32>
    %cst_13 = arith.constant dense<0.000000e+00> : vector<128xf32>
    %28 = vector.multi_reduction <add>, %27, %cst_13 [0] : vector<16x128xf32> to vector<128xf32>
    %29 = vector.shape_cast %28 : vector<128xf32> to vector<1x128xf32>
    %c0_14 = arith.constant 0 : index
    %c0_15 = arith.constant 0 : index
    %30 = vector.load %arg6[%c0_14, %c0_15] : memref<1x128xf32, #tpu.memory_space<vmem>>, vector<1x128xf32>
    %31 = arith.addf %29, %30 : vector<1x128xf32>
    %c0_16 = arith.constant 0 : index
    %c0_17 = arith.constant 0 : index
    %c0_18 = arith.constant 0 : index
    %32 = vector.load %arg7[%c0_16, %c0_17, %c0_18] : memref<1x1x128xf32, #tpu.memory_space<vmem>>, vector<1x1x128xf32>
    %33 = vector.shape_cast %32 : vector<1x1x128xf32> to vector<1x128xf32>
    %34 = vector.shape_cast %31 : vector<1x128xf32> to vector<1x1x128xf32>
    tpu.vector_store %arg7[%c0_16, %c0_17, %c0_18], %34 {strides = array<i32>} : memref<1x1x128xf32, #tpu.memory_space<vmem>>, vector<1x1x128xf32>,
    return
  }
  func.func @transform_0(%arg0: i32) -> (i32, i32, i32) {
    %c0_i32 = arith.constant 0 : i32
    %c0_i32_0 = arith.constant 0 : i32
    %c0_i32_1 = arith.constant 0 : i32
    return %arg0, %c0_i32, %c0_i32_0 : i32, i32, i32
  }
  func.func @transform_1(%arg0: i32) -> (i32, i32) {
    %c0_i32 = arith.constant 0 : i32
    %c0_i32_0 = arith.constant 0 : i32
    %c0_i32_1 = arith.constant 0 : i32
    return %c0_i32, %c0_i32_0 : i32, i32
  }
  func.func @transform_2(%arg0: i32) -> (i32, i32) {
    %c0_i32 = arith.constant 0 : i32
    %c0_i32_0 = arith.constant 0 : i32
    %c0_i32_1 = arith.constant 0 : i32
    return %c0_i32, %c0_i32_0 : i32, i32
  }
  func.func @transform_3(%arg0: i32) -> (i32, i32) {
    %c0_i32 = arith.constant 0 : i32
    %c0_i32_0 = arith.constant 0 : i32
    %c0_i32_1 = arith.constant 0 : i32
    return %c0_i32, %c0_i32_0 : i32, i32
  }
  func.func @transform_4(%arg0: i32) -> (i32, i32) {
    %c0_i32 = arith.constant 0 : i32
    %c0_i32_0 = arith.constant 0 : i32
    %c0_i32_1 = arith.constant 0 : i32
    return %c0_i32, %c0_i32_0 : i32, i32
  }
  func.func @transform_5(%arg0: i32) -> (i32, i32) {
    %c0_i32 = arith.constant 0 : i32
    %c0_i32_0 = arith.constant 0 : i32
    %c0_i32_1 = arith.constant 0 : i32
    return %c0_i32, %c0_i32_0 : i32, i32
  }
  func.func @transform_6(%arg0: i32) -> (i32, i32, i32) {
    %c0_i32 = arith.constant 0 : i32
    %c0_i32_0 = arith.constant 0 : i32
    %c0_i32_1 = arith.constant 0 : i32
    return %arg0, %c0_i32, %c0_i32_0 : i32, i32, i32
  }
}

</mosaic_0001>

<llo_original>
// kernel: tpu_custom_call.1
$region0: #{tpu_custom_call.1}
  #allocation0 [shape = 'u32[]', space=smem, size = 0x4, offset = 0x4, fixed_abs, tag = 'smem constant byte address 0x4 - core index']
  #allocation1 [shape = 'u32[144,128]{1,0:T(1,128)}', space=vmem, size = 0x12000, scoped, tag = 'internal scratch']
  %s0 = inlined_call_operand.vmem [shape: bf16[2,3,362], index: 0, kind: input, shape index: {}]
  %s1 = inlined_call_operand.vmem [shape: bf16[16,32], index: 1, kind: input, shape index: {}]
  %s2 = inlined_call_operand.vmem [shape: f32[16,1], index: 2, kind: input, shape index: {}]
  %s3 = inlined_call_operand.vmem [shape: f32[1,324], index: 3, kind: input, shape index: {}]
  %s4 = inlined_call_operand.vmem [shape: f32[16,128], index: 4, kind: input, shape index: {}]
  %s5 = inlined_call_operand.vmem [shape: f32[1,128], index: 5, kind: input, shape index: {}]
  %s6 = inlined_call_operand.hbm [shape: f32[2,1,128], index: 6, kind: output, shape index: {}]
  %s7 = sld [smem:[#allocation0]]
  $region57: #{tpu_custom_call.1} parent=0
    _
  %s9 = ssub.s32 1, %s7
  %s10 = scalar_select 0, %s9, %s7
  $region1: #{tpu_custom_call.1} parent=0
    #allocation2 [shape = 'u8[1024]{0}', space=vmem, size = 0x400, scoped, tag = 'output window, operand 0']
    #allocation3 [shape = 's32[2]{0}', space=sflag, size = 0x8, scoped, tag = 'scoped memory for tpu_custom_call.1']
    %11 = vsyncpa [#allocation3], 0
    %s12 = scalar_lea.sflag [#allocation3], 1
    %13 = vsyncpa %s12, 0
    loop: start=0, step=1, limit=4
    $region2: #{tpu_custom_call.1} parent=1 // loop_pre_header
      _
    $region3: #{tpu_custom_call.1} parent=1 // loop_header
      %s15 = sphi 0, %s19
      %p16 = scmp.ge.s32.totalorder %s15, 4
      %s25 = sphi 0, %s27
      %s28 = sphi 0, %s25
      %s29 = sphi 0, %s28
      %s45 = sphi 0, %s29
      %s49 = sphi 0, %s49
      %s51 = sphi 0, %s49
      %s52 = sphi 0, %s51
      %s66 = sphi 0, %s52
      %s70 = sphi 0, %s70
      %s72 = sphi 0, %s70
      %s73 = sphi 0, %s72
      %s87 = sphi 0, %s73
      %s91 = sphi 0, %s91
      %s93 = sphi 0, %s91
      %s94 = sphi 0, %s93
      %s108 = sphi 0, %s94
      %s112 = sphi 0, %s112
      %s114 = sphi 0, %s112
      %s115 = sphi 0, %s114
      %s129 = sphi 0, %s115
      %s133 = sphi 0, %s133
      %s135 = sphi 0, %s133
      %s136 = sphi 0, %s135
      %s150 = sphi 0, %s136
      %s156 = sphi 0, %s158
      %s159 = sphi 0, %s156
      %s160 = sphi 0, %s159
      %s176 = sphi 0, %s160
    $region4: #{tpu_custom_call.1} parent=1 // loop_header_branch
      %18 = sbr.rel (%p16) target = $region8
    $region5: #{tpu_custom_call.1} parent=1 // loop_body
      %s20 = ssub.s32 %s15, 1
      %s21 = ssub.s32 %s15, 2
      %s22 = sadd.s32 %s15, 1
      %s23 = ssub.s32 %s15, %s22
      %p24 = scmp.eq.s32.totalorder %s23, 0
      %s26 = sadd.s32 %s25, 1
      %s27 = scalar_select %p24, %s25, %s26
      %p30 = pneg %p24
      %p31 = scmp.eq.s32.totalorder %s15, 1
      %p32 = por %p30, %p31
      %p33 = scmp.ne.s32.totalorder %s25, %s28
      %p34 = scmp.eq.s32.totalorder %s15, 0
      %p35 = por %p33, %p34
      %p36 = scmp.ne.s32.totalorder %s25, %s28
      %p37 = scmp.eq.s32.totalorder %s20, 1
      %p38 = por %p36, %p37
      %p39 = scmp.ne.s32.totalorder %s28, %s29
      %p40 = scmp.eq.s32.totalorder %s20, 0
      %p41 = por %p39, %p40
      %p42 = scmp.ne.s32.totalorder %s28, %s29
      %p43 = scmp.eq.s32.totalorder %s21, 1
      %p44 = por %p42, %p43
      %p46 = scmp.ne.s32.totalorder %s29, %s45
      %p47 = scmp.eq.s32.totalorder %s21, 0
      %p48 = por %p46, %p47
      %s50 = sadd.s32 %s49, 1
      %p53 = scmp.eq.s32.totalorder %s15, 1
      %p54 = scmp.ne.s32.totalorder %s49, %s51
      %p55 = scmp.eq.s32.totalorder %s15, 0
      %p56 = por %p54, %p55
      %p57 = scmp.ne.s32.totalorder %s49, %s51
      %p58 = scmp.eq.s32.totalorder %s20, 1
      %p59 = por %p57, %p58
      %p60 = scmp.ne.s32.totalorder %s51, %s52
      %p61 = scmp.eq.s32.totalorder %s20, 0
      %p62 = por %p60, %p61
      %p63 = scmp.ne.s32.totalorder %s51, %s52
      %p64 = scmp.eq.s32.totalorder %s21, 1
      %p65 = por %p63, %p64
      %p67 = scmp.ne.s32.totalorder %s52, %s66
      %p68 = scmp.eq.s32.totalorder %s21, 0
      %p69 = por %p67, %p68
      %s71 = sadd.s32 %s70, 1
      %p74 = scmp.eq.s32.totalorder %s15, 1
      %p75 = scmp.ne.s32.totalorder %s70, %s72
      %p76 = scmp.eq.s32.totalorder %s15, 0
      %p77 = por %p75, %p76
      %p78 = scmp.ne.s32.totalorder %s70, %s72
      %p79 = scmp.eq.s32.totalorder %s20, 1
      %p80 = por %p78, %p79
      %p81 = scmp.ne.s32.totalorder %s72, %s73
      %p82 = scmp.eq.s32.totalorder %s20, 0
      %p83 = por %p81, %p82
      %p84 = scmp.ne.s32.totalorder %s72, %s73
      %p85 = scmp.eq.s32.totalorder %s21, 1
      %p86 = por %p84, %p85
      %p88 = scmp.ne.s32.totalorder %s73, %s87
      %p89 = scmp.eq.s32.totalorder %s21, 0
      %p90 = por %p88, %p89
      %s92 = sadd.s32 %s91, 1
      %p95 = scmp.eq.s32.totalorder %s15, 1
      %p96 = scmp.ne.s32.totalorder %s91, %s93
      %p97 = scmp.eq.s32.totalorder %s15, 0
      %p98 = por %p96, %p97
      %p99 = scmp.ne.s32.totalorder %s91, %s93
      %p100 = scmp.eq.s32.totalorder %s20, 1
      %p101 = por %p99, %p100
      %p102 = scmp.ne.s32.totalorder %s93, %s94
      %p103 = scmp.eq.s32.totalorder %s20, 0
      %p104 = por %p102, %p103
      %p105 = scmp.ne.s32.totalorder %s93, %s94
      %p106 = scmp.eq.s32.totalorder %s21, 1
      %p107 = por %p105, %p106
      %p109 = scmp.ne.s32.totalorder %s94, %s108
      %p110 = scmp.eq.s32.totalorder %s21, 0
      %p111 = por %p109, %p110
      %s113 = sadd.s32 %s112, 1
      %p116 = scmp.eq.s32.totalorder %s15, 1
      %p117 = scmp.ne.s32.totalorder %s112, %s114
      %p118 = scmp.eq.s32.totalorder %s15, 0
      %p119 = por %p117, %p118
      %p120 = scmp.ne.s32.totalorder %s112, %s114
      %p121 = scmp.eq.s32.totalorder %s20, 1
      %p122 = por %p120, %p121
      %p123 = scmp.ne.s32.totalorder %s114, %s115
      %p124 = scmp.eq.s32.totalorder %s20, 0
      %p125 = por %p123, %p124
      %p126 = scmp.ne.s32.totalorder %s114, %s115
      %p127 = scmp.eq.s32.totalorder %s21, 1
      %p128 = por %p126, %p127
      %p130 = scmp.ne.s32.totalorder %s115, %s129
      %p131 = scmp.eq.s32.totalorder %s21, 0
      %p132 = por %p130, %p131
      %s134 = sadd.s32 %s133, 1
      %p137 = scmp.eq.s32.totalorder %s15, 1
      %p138 = scmp.ne.s32.totalorder %s133, %s135
      %p139 = scmp.eq.s32.totalorder %s15, 0
      %p140 = por %p138, %p139
      %p141 = scmp.ne.s32.totalorder %s133, %s135
      %p142 = scmp.eq.s32.totalorder %s20, 1
      %p143 = por %p141, %p142
      %p144 = scmp.ne.s32.totalorder %s135, %s136
      %p145 = scmp.eq.s32.totalorder %s20, 0
      %p146 = por %p144, %p145
      %p147 = scmp.ne.s32.totalorder %s135, %s136
      %p148 = scmp.eq.s32.totalorder %s21, 1
      %p149 = por %p147, %p148
      %p151 = scmp.ne.s32.totalorder %s136, %s150
      %p152 = scmp.eq.s32.totalorder %s21, 0
      %p153 = por %p151, %p152
      %s154 = ssub.s32 %s15, %s22
      %p155 = scmp.eq.s32.totalorder %s154, 0
      %s157 = sadd.s32 %s156, 1
      %s158 = scalar_select %p155, %s156, %s157
      %p161 = pneg %p155
      %p162 = scmp.eq.s32.totalorder %s15, 1
      %p163 = por %p161, %p162
      %p164 = scmp.ne.s32.totalorder %s156, %s159
      %p165 = scmp.eq.s32.totalorder %s15, 0
      %p166 = por %p164, %p165
      %p167 = scmp.ne.s32.totalorder %s156, %s159
      %p168 = scmp.eq.s32.totalorder %s20, 1
      %p169 = por %p167, %p168
      %p170 = scmp.ne.s32.totalorder %s159, %s160
      %p171 = scmp.eq.s32.totalorder %s20, 0
      %p172 = por %p170, %p171
      %p173 = scmp.ne.s32.totalorder %s159, %s160
      %p174 = scmp.eq.s32.totalorder %s21, 1
      %p175 = por %p173, %p174
      %p177 = scmp.ne.s32.totalorder %s160, %s176
      %p178 = scmp.eq.s32.totalorder %s21, 0
      %p179 = por %p177, %p178
      %p180 = scmp.le.s32.totalorder 1, %s15
      %p181 = scmp.lt.s32.totalorder %s15, 3
      %p182 = pnand %p180, %p181
      %p183 = pneg %p182
      // Predicated region
      $region9: #{tpu_custom_call.1} parent=5 // pred_check
        _
      $region10: #{tpu_custom_call.1} parent=5 // pred_check_branch
        %185 = sbr.rel (%p182) target = $region12
      $region11: #{tpu_custom_call.1} parent=5 // pred_region
        %s186 = ssub.s32 %s15, 1
        // Predicated region
        $region13: #{tpu_custom_call.1} parent=11 // pred_check
          %p187 = pneg %p62
        $region14: #{tpu_custom_call.1} parent=11 // pred_check_branch
          %189 = sbr.rel (%p187) target = $region16
        $region15: #{tpu_custom_call.1} parent=11 // pred_region
          _
        $region16: #{tpu_custom_call.1} parent=11 // pred_fallthru
          _
        // Predicated region
        $region17: #{tpu_custom_call.1} parent=11 // pred_check
          %p190 = pneg %p83
        $region18: #{tpu_custom_call.1} parent=11 // pred_check_branch
          %192 = sbr.rel (%p190) target = $region20
        $region19: #{tpu_custom_call.1} parent=11 // pred_region
          _
        $region20: #{tpu_custom_call.1} parent=11 // pred_fallthru
          _
        // Predicated region
        $region21: #{tpu_custom_call.1} parent=11 // pred_check
          %p193 = pneg %p104
        $region22: #{tpu_custom_call.1} parent=11 // pred_check_branch
          %195 = sbr.rel (%p193) target = $region24
        $region23: #{tpu_custom_call.1} parent=11 // pred_region
          _
        $region24: #{tpu_custom_call.1} parent=11 // pred_fallthru
          _
        // Predicated region
        $region25: #{tpu_custom_call.1} parent=11 // pred_check
          %p196 = pneg %p125
        $region26: #{tpu_custom_call.1} parent=11 // pred_check_branch
          %198 = sbr.rel (%p196) target = $region28
        $region27: #{tpu_custom_call.1} parent=11 // pred_region
          _
        $region28: #{tpu_custom_call.1} parent=11 // pred_fallthru
          _
        // Predicated region
        $region29: #{tpu_custom_call.1} parent=11 // pred_check
          %p199 = pneg %p146
        $region30: #{tpu_custom_call.1} parent=11 // pred_check_branch
          %201 = sbr.rel (%p199) target = $region32
        $region31: #{tpu_custom_call.1} parent=11 // pred_region
          _
        $region32: #{tpu_custom_call.1} parent=11 // pred_fallthru
          _
      $region12: #{tpu_custom_call.1} parent=5 // pred_fallthru
        _
      %p202 = scmp.lt.s32.totalorder %s15, 2
      // Predicated region
      $region33: #{tpu_custom_call.1} parent=5 // pred_check
        %p203 = pneg %p202
      $region34: #{tpu_custom_call.1} parent=5 // pred_check_branch
        %205 = sbr.rel (%p203) target = $region36
      $region35: #{tpu_custom_call.1} parent=5 // pred_region
        // Predicated region
        $region37: #{tpu_custom_call.1} parent=35 // pred_check
          %p206 = pneg %p35
        $region38: #{tpu_custom_call.1} parent=35 // pred_check_branch
          %208 = sbr.rel (%p206) target = $region40
        $region39: #{tpu_custom_call.1} parent=35 // pred_region
          %p209 = scmp.lt.s32.totalorder %s15, 1
          %s210 = scalar_select %p209, %s15, 1
          %s211 = smul.addr %s210, 3
          %s212 = smul.addr %s211, 2
          %s213 = scalar_lea.vmem %s0, %s212
        $region40: #{tpu_custom_call.1} parent=35 // pred_fallthru
          _
      $region36: #{tpu_custom_call.1} parent=5 // pred_fallthru
        _
      %p214 = scmp.le.s32.totalorder 1, %s15
      %p215 = scmp.lt.s32.totalorder %s15, 3
      %p216 = pnand %p214, %p215
      %p217 = pneg %p216
      // Predicated region
      $region41: #{tpu_custom_call.1} parent=5 // pred_check
        _
      $region42: #{tpu_custom_call.1} parent=5 // pred_check_branch
        %219 = sbr.rel (%p216) target = $region44
      $region43: #{tpu_custom_call.1} parent=5 // pred_region
        %s220 = ssub.s32 %s15, 1
        %p221 = scmp.lt.s32.totalorder %s20, 1
        %s222 = scalar_select %p221, %s20, 1
        %s223 = smul.addr %s222, 3
        %s224 = smul.addr %s223, 2
        %s225 = scalar_lea.vmem %s0, %s224
        %p226 = pneg %p41
        %p227 = pneg %p38
        %p228 = pneg %p62
        %p229 = pneg %p59
        %p230 = pneg %p83
        %p231 = pneg %p80
        %p232 = pneg %p104
        %p233 = pneg %p101
        %p234 = pneg %p125
        %p235 = pneg %p122
        %p236 = pneg %p146
        %p237 = pneg %p143
        %p238 = pneg %p172
        %p239 = pneg %p169
        %s240 = sand.u32 %s159, 1
        %s241 = scalar_lea.sflag [#allocation3], %s240
        %s242 = sand.u32 %s159, 1
        %s243 = scalar_lea.vmem [#allocation2], %s242
        %p244 = scmp.lt.s32.totalorder %s20, 1
        %s245 = scalar_select %p244, %s20, 1
        %s246 = smul.addr %s245, 3
        %s247 = smul.addr %s246, 2
        %s248 = scalar_lea.vmem %s0, %s247
        %v250 = vld [vmem:[%s248] sm:$0x3f]
        %v252 = vcombine.high %v250, %v250
        %v254 = vunpack.c.l.s4 1983009808
        %v255 = vunpack.c.0.s8 %v254
        %v256 = vlaneseq
        %v257 = vshrl.u32 %v256, 7
        %v258 = vsub.s32 %v255, %v257
        %v259 = vrot.slane %v250, %v258
        %v261 = vunpack.c.l.s4 1983009808
        %v262 = vunpack.c.0.s8 %v261
        %v263 = vlaneseq
        %v264 = vshrl.u32 %v263, 7
        %v265 = vsub.s32 %v262, %v264
        %v266 = vrot.slane %v252, %v265
        %v267 = vcombine.high %v259, %v259
        %v272 = vshrl.u32 %v259, 16
        %v274 = vrot.slane %v272, 6
        %v275 = vshll.u32 %v259, 16
        %v277 = vrot.slane %v275, 7
        %v278 = vor.u32 %v274, %v277
        %v280 = vshrl.u32 %v267, 16
        %v282 = vrot.slane %v280, 6
        %v283 = vshll.u32 %v267, 16
        %v285 = vrot.slane %v283, 7
        %v286 = vor.u32 %v282, %v285
        %v288 = vshrl.u32 %v266, 16
        %v290 = vrot.slane %v288, 6
        %v291 = vshll.u32 %v266, 16
        %v293 = vrot.slane %v291, 7
        %v294 = vor.u32 %v290, %v293
        %295 = vrot.lane.b32.xlu0 %v278, 127
        %v296 = vpop.permute.xlu0 %295
        %297 = vrot.lane.b32.xlu0 %v286, 127
        %v298 = vpop.permute.xlu0 %297
        %299 = vrot.lane.b32.xlu0 %v294, 127
        %v300 = vpop.permute.xlu0 %299
        %vm301 = vcmask 1039360
        %v302 = vsel %vm301, %v296, %v298
        %v303 = vsel %vm301, %v298, %v300
        %v307 = vrot.slane %v259, 5
        %v308 = vrot.slane %v267, 5
        %v309 = vrot.slane %v266, 5
        %310 = vrot.lane.b32.xlu0 %v307, 126
        %v311 = vpop.permute.xlu0 %310
        %312 = vrot.lane.b32.xlu0 %v308, 126
        %v313 = vpop.permute.xlu0 %312
        %314 = vrot.lane.b32.xlu0 %v309, 126
        %v315 = vpop.permute.xlu0 %314
        %vm316 = vcmask 1031168
        %v317 = vsel %vm316, %v311, %v313
        %v318 = vsel %vm316, %v313, %v315
        %v319 = vrot.slane %v272, 3
        %v320 = vrot.slane %v275, 4
        %v321 = vor.u32 %v319, %v320
        %v322 = vrot.slane %v280, 3
        %v323 = vrot.slane %v283, 4
        %v324 = vor.u32 %v322, %v323
        %v325 = vrot.slane %v288, 3
        %v326 = vrot.slane %v291, 4
        %v327 = vor.u32 %v325, %v326
        %328 = vrot.lane.b32.xlu0 %v321, 110
        %v329 = vpop.permute.xlu0 %328
        %330 = vrot.lane.b32.xlu0 %v324, 110
        %v331 = vpop.permute.xlu0 %330
        %332 = vrot.lane.b32.xlu0 %v327, 110
        %v333 = vpop.permute.xlu0 %332
        %vm334 = vcmask 900096
        %v335 = vsel %vm334, %v329, %v331
        %v336 = vsel %vm334, %v331, %v333
        %v340 = vcombine.low %v250, %v250
        %v342 = vunpack.c.l.s4 1983009808
        %v343 = vunpack.c.0.s8 %v342
        %v344 = vlaneseq
        %v345 = vshrl.u32 %v344, 7
        %v346 = vsub.s32 %v343, %v345
        %v347 = vrot.slane %v340, %v346
        %v348 = vcombine.low %v347, %v347
        %v349 = vcombine.low %v259, %v259
        %350 = vrot.lane.b32.xlu0 %v348, 109
        %v351 = vpop.permute.xlu0 %350
        %352 = vrot.lane.b32.xlu0 %v347, 109
        %v353 = vpop.permute.xlu0 %352
        %354 = vrot.lane.b32.xlu0 %v349, 109
        %v355 = vpop.permute.xlu0 %354
        %vm356 = vcmask 891904
        %v357 = vsel %vm356, %v351, %v353
        %v358 = vsel %vm356, %v353, %v355
        %v359 = vrot.slane %v275, 1
        %v360 = vrot.slane %v283, 1
        %v361 = vrot.slane %v291, 1
        %v362 = vor.u32 %v272, %v359
        %v363 = vor.u32 %v280, %v360
        %v364 = vor.u32 %v288, %v361
        %365 = vrot.lane.b32.xlu0 %v359, 108
        %v366 = vpop.permute.xlu0 %365
        %367 = vrot.lane.b32.xlu0 %v360, 108
        %v368 = vpop.permute.xlu0 %367
        %369 = vrot.lane.b32.xlu0 %v361, 108
        %v370 = vpop.permute.xlu0 %369
        %371 = vrot.lane.b32.xlu0 %v362, 108
        %v372 = vpop.permute.xlu0 %371
        %373 = vrot.lane.b32.xlu0 %v363, 108
        %v374 = vpop.permute.xlu0 %373
        %375 = vrot.lane.b32.xlu0 %v364, 108
        %v376 = vpop.permute.xlu0 %375
        %vm377 = vcmask 883712
        %v378 = vsel %vm377, %v366, %v368
        %v379 = vsel %vm377, %v368, %v370
        %v380 = vsel %vm377, %v372, %v374
        %v381 = vsel %vm377, %v374, %v376
        %v385 = vrot.slane %v259, 7
        %v386 = vrot.slane %v267, 7
        %v387 = vrot.slane %v266, 7
        %388 = vrot.lane.b32.xlu0 %v385, 92
        %v389 = vpop.permute.xlu0 %388
        %390 = vrot.lane.b32.xlu0 %v386, 92
        %v391 = vpop.permute.xlu0 %390
        %392 = vrot.lane.b32.xlu0 %v387, 92
        %v393 = vpop.permute.xlu0 %392
        %vm394 = vcmask 752640
        %v395 = vsel %vm394, %v389, %v391
        %v396 = vsel %vm394, %v391, %v393
        %v397 = vrot.slane %v272, 5
        %v398 = vrot.slane %v275, 6
        %v399 = vor.u32 %v397, %v398
        %v400 = vrot.slane %v280, 5
        %v401 = vrot.slane %v283, 6
        %v402 = vor.u32 %v400, %v401
        %v403 = vrot.slane %v288, 5
        %v404 = vrot.slane %v291, 6
        %v405 = vor.u32 %v403, %v404
        %406 = vrot.lane.b32.xlu0 %v399, 91
        %v407 = vpop.permute.xlu0 %406
        %408 = vrot.lane.b32.xlu0 %v402, 91
        %v409 = vpop.permute.xlu0 %408
        %410 = vrot.lane.b32.xlu0 %v405, 91
        %v411 = vpop.permute.xlu0 %410
        %vm412 = vcmask 744448
        %v413 = vsel %vm412, %v407, %v409
        %v414 = vsel %vm412, %v409, %v411
        %v418 = vcombine.low %v266, %v266
        %419 = vrot.lane.b32.xlu0 %v349, 90
        %v420 = vpop.permute.xlu0 %419
        %421 = vrot.lane.b32.xlu0 %v259, 90
        %v422 = vpop.permute.xlu0 %421
        %423 = vrot.lane.b32.xlu0 %v418, 90
        %v424 = vpop.permute.xlu0 %423
        %vm425 = vcmask 736256
        %v426 = vsel %vm425, %v420, %v422
        %v427 = vsel %vm425, %v422, %v424
        %vm428 = vcmask 1041408
        %vm429 = vsmask.f32 1280
        %vm430 = vmand %vm428, %vm429
        %v431 = vsel %vm430, %v259, %v302
        %v432 = vsel %vm430, %v267, %v303
        %v433 = vsel %vm430, %v266, %v300
        %vm434 = vcmask 1042432
        %v437 = vsel %vm434, %v431, %v317
        %v441 = vsel %vm434, %v432, %v318
        %v445 = vsel %vm434, %v433, %v315
        %vm447 = vcmask 1044480
        %vm448 = vsmask.f32 4352
        %vm449 = vmand %vm447, %vm448
        %v450 = vsel %vm449, %v437, %v335
        %v451 = vsel %vm449, %v441, %v336
        %v452 = vsel %vm449, %v445, %v333
        %vm453 = vcmask 1045504
        %v456 = vsel %vm453, %v450, %v357
        %v460 = vsel %vm453, %v451, %v358
        %v464 = vsel %vm453, %v452, %v355
        %vm466 = vcmask 1047552
        %vm467 = vsmask.f32 7424
        %vm468 = vmand %vm466, %vm467
        %v469 = vsel %vm468, %v456, %v378
        %v470 = vsel %vm468, %v460, %v379
        %v471 = vsel %vm468, %v464, %v370
        %vm472 = vcmask 1040384
        %v475 = vsel %vm472, %v380, %v395
        %v479 = vsel %vm472, %v381, %v396
        %v483 = vsel %vm472, %v376, %v393
        %vm485 = vcmask 1042432
        %vm486 = vsmask.f32 2304
        %vm487 = vmand %vm485, %vm486
        %v488 = vsel %vm487, %v475, %v413
        %v489 = vsel %vm487, %v479, %v414
        %v490 = vsel %vm487, %v483, %v411
        %vm491 = vcmask 1043456
        %v494 = vsel %vm491, %v488, %v426
        %v498 = vsel %vm491, %v489, %v427
        %v502 = vsel %vm491, %v490, %v424
        %vm504 = vcmask 1045504
        %vm505 = vsmask.f32 5376
        %vm506 = vmand %vm504, %vm505
        %v507 = vsel %vm506, %v494, 0
        %v508 = vsel %vm506, %v498, 0
        %v509 = vsel %vm506, %v502, 0
        %v510 = vld [vmem:[%s1] sm:$0xf]
        %v511 = vld [vmem:[%s1 + $0x4] sm:$0xf]
        %v512 = vld [vmem:[%s2] sm:$0xff]
        %v513 = vld [vmem:[%s2 + $0x8] sm:$0xff]
        %515 = vset.pattern.permute.xlu0 0
        %516 = vperm.xlu0 %515, %v512
        %v517 = vpop.permute.xlu0 %516
        %520 = vset.pattern.permute.xlu0 0
        %521 = vperm.xlu0 %520, %v513
        %v522 = vpop.permute.xlu0 %521
        %v526 = vunpack.c.l.b16 %v510
        %v527 = vunpack.c.l.b16 %v511
        %v528 = vpack.c.b16 %v527, %v526
        %vm529 = vcmask 261120
        %v531 = vsel %vm529, %v528, 0
        %533 = vmatprep.subr.bf16.mxu0 0
        %534 = vmatpush1.bf16.msra.mxu0 0
        %535 = vmatprep.subr.bf16.mxu0 0
        %536 = vmatpush1.bf16.msra.mxu0 0
        %537 = vmatprep.subr.bf16.mxu0 0
        %538 = vmatpush1.bf16.msra.mxu0 0
        %539 = vmatprep.subr.bf16.mxu0 0
        %540 = vmatpush1.bf16.msra.mxu0 0
        %541 = vmatprep.subr.bf16.mxu0 0
        %542 = vmatpush1.bf16.msra.mxu0 0
        %543 = vmatprep.subr.bf16.mxu0 0
        %544 = vmatpush1.bf16.msra.mxu0 0
        %545 = vmatprep.subr.bf16.mxu0 %v508
        %546 = vmatpush1.bf16.msra.mxu0 %v507
        %547 = vmatprep.subr.bf16.mxu0 %v470
        %548 = vmatpush1.bf16.msra.mxu0 %v469
        %549 = vmatprep.subr.bf16.mxu0 0
        %550 = vmatpush2.bf16.msra.mxu0 0
        %551 = vmatprep.subr.bf16.mxu0 0
        %552 = vmatpush2.bf16.msra.mxu0 0
        %553 = vmatprep.subr.bf16.mxu0 0
        %554 = vmatpush2.bf16.msra.mxu0 0
        %555 = vmatprep.subr.bf16.mxu0 0
        %556 = vmatpush2.bf16.msra.mxu0 0
        %557 = vmatprep.subr.bf16.mxu0 0
        %558 = vmatpush2.bf16.msra.mxu0 0
        %559 = vmatprep.subr.bf16.mxu0 0
        %560 = vmatpush2.bf16.msra.mxu0 0
        %561 = vmatprep.subr.bf16.mxu0 0
        %562 = vmatpush2.bf16.msra.mxu0 0
        %563 = vmatprep.subr.bf16.mxu0 0
        %564 = vmatpush2.bf16.msra.mxu0 0
        %565 = vmatprep.mubr.bf16.mxu0 0
        %566 = vmatmul.mubr.bf16.gmra.mxu0 %v531
        %v567 = vpop.f32.mrf.mxu0
        %v568 = vadd.f32 %v517, %v567
        %v569 = vpop.f32.mrf.mxu0
        %v570 = vadd.f32 %v517, %v569
        %v571 = vpop.f32.mrf.mxu0
        %v572 = vadd.f32 %v522, %v571
        %v573 = vpop.f32.mrf.mxu0
        %v574 = vadd.f32 %v522, %v573
        %575 = vdwg.mxu0
        %576 = vmatprep.subr.bf16.mxu0 0
        %577 = vmatpush1.bf16.msra.mxu0 0
        %578 = vmatprep.subr.bf16.mxu0 0
        %579 = vmatpush1.bf16.msra.mxu0 0
        %580 = vmatprep.subr.bf16.mxu0 0
        %581 = vmatpush1.bf16.msra.mxu0 0
        %582 = vmatprep.subr.bf16.mxu0 0
        %583 = vmatpush1.bf16.msra.mxu0 0
        %584 = vmatprep.subr.bf16.mxu0 0
        %585 = vmatpush1.bf16.msra.mxu0 0
        %586 = vmatprep.subr.bf16.mxu0 0
        %587 = vmatpush1.bf16.msra.mxu0 0
        %588 = vmatprep.subr.bf16.mxu0 0
        %589 = vmatpush1.bf16.msra.mxu0 %v509
        %590 = vmatprep.subr.bf16.mxu0 0
        %591 = vmatpush1.bf16.msra.mxu0 %v471
        %592 = vmatprep.subr.bf16.mxu0 0
        %593 = vmatpush2.bf16.msra.mxu0 0
        %594 = vmatprep.subr.bf16.mxu0 0
        %595 = vmatpush2.bf16.msra.mxu0 0
        %596 = vmatprep.subr.bf16.mxu0 0
        %597 = vmatpush2.bf16.msra.mxu0 0
        %598 = vmatprep.subr.bf16.mxu0 0
        %599 = vmatpush2.bf16.msra.mxu0 0
        %600 = vmatprep.subr.bf16.mxu0 0
        %601 = vmatpush2.bf16.msra.mxu0 0
        %602 = vmatprep.subr.bf16.mxu0 0
        %603 = vmatpush2.bf16.msra.mxu0 0
        %604 = vmatprep.subr.bf16.mxu0 0
        %605 = vmatpush2.bf16.msra.mxu0 0
        %606 = vmatprep.subr.bf16.mxu0 0
        %607 = vmatpush2.bf16.msra.mxu0 0
        %608 = vmatprep.mubr.bf16.mxu0 0
        %609 = vmatmul.mubr.bf16.gmra.mxu0 %v531
        %v610 = vpop.f32.mrf.mxu0
        %v611 = vadd.f32 %v517, %v610
        %v612 = vpop.f32.mrf.mxu0
        %v613 = vpop.f32.mrf.mxu0
        %v614 = vadd.f32 %v522, %v613
        %v615 = vpop.f32.mrf.mxu0
        %616 = vdwg.mxu0
        %v617 = vmax.f32 %v568, 0.0
        %v618 = vmax.f32 %v570, 0.0
        %v619 = vmax.f32 %v611, 0.0
        %v620 = vmax.f32 %v572, 0.0
        %v621 = vmax.f32 %v574, 0.0
        %v622 = vmax.f32 %v614, 0.0
        %v623 = vld [vmem:[%s3] sm:$0x7]
        %v625 = vlaneseq
        %v626 = vshrl.u32 %v625, 7
        %v627 = vsub.s32 0, %v626
        %v628 = vrot.slane %v623, %v627
        %v629 = vlaneseq
        %v630 = vshrl.u32 %v629, 7
        %v631 = vsub.s32 1, %v630
        %v632 = vrot.slane %v623, %v631
        %v633 = vlaneseq
        %v634 = vshrl.u32 %v633, 7
        %v635 = vsub.s32 2, %v634
        %v636 = vrot.slane %v623, %v635
        %v640 = vmul.f32 %v617, %v628
        %v641 = vmul.f32 %v618, %v632
        %v642 = vmul.f32 %v619, %v636
        %v643 = vmul.f32 %v620, %v628
        %v644 = vmul.f32 %v621, %v632
        %v645 = vmul.f32 %v622, %v636
        %v646 = vadd.f32 %v640, %v641
        %vm647 = vcmask 556032
        %v648 = vsel %vm647, %v642, 0.0
        %v649 = vadd.f32 %v646, %v648
        %650 = vadd.xlane.f32.xlu0 %v649
        %v651 = vpop.xlane.xlu0 %650
        %v652 = vadd.f32 %v643, %v644
        %v653 = vsel %vm647, %v645, 0.0
        %v654 = vadd.f32 %v652, %v653
        %655 = vadd.xlane.f32.xlu0 %v654
        %v656 = vpop.xlane.xlu0 %655
        %v657 = vld [vmem:[%s4] sm:$0xff]
        %v658 = vld [vmem:[%s4 + $0x8] sm:$0xff]
        %v659 = vmul.f32 %v657, %v651
        %v660 = vmul.f32 %v658, %v656
        %v661 = vadd.f32 %v659, %v660
        %v662 = vrot.slane %v661, 4
        %v663 = vadd.f32 %v661, %v662
        %v664 = vrot.slane %v663, 2
        %v665 = vadd.f32 %v663, %v664
        %v666 = vrot.slane %v665, 1
        %v667 = vadd.f32 %v665, %v666
        %v668 = vld [vmem:[%s5] sm:$0x1]
        %v669 = vadd.f32 %v667, %v668
        %670 = vst [vmem:[%s243] sm:$0x1] %v669
        %s671 = sand.u32 %s159, 1
        %s672 = scalar_lea.sflag [#allocation3], %s671
        %s673 = sand.u32 %s159, 1
        %s674 = scalar_lea.vmem [#allocation2], %s673
        // Predicated region
        $region45: #{tpu_custom_call.1} parent=43 // pred_check
          %p675 = pneg %p169
        $region46: #{tpu_custom_call.1} parent=43 // pred_check_branch
          %677 = sbr.rel (%p675) target = $region48
        $region47: #{tpu_custom_call.1} parent=43 // pred_region
          %s679 = ssub.s32 16, 16
          %680 = vsyncadd %s672, %s679
          %s681 = smul.addr %s20, 16
          %s682 = scalar_lea.hbm %s6, %s681
          %s684 = sshll.u32 %s674, 4
          %s685 = int_to_ptr.vmem [resolvable:$true] %s684
          %687 = dma.vmem_to_hbm [thread:$0]  %s685, 16, %s682, %s672
        $region48: #{tpu_custom_call.1} parent=43 // pred_fallthru
          _
      $region44: #{tpu_custom_call.1} parent=5 // pred_fallthru
        _
      %p688 = scmp.le.s32.totalorder 2, %s15
      // Predicated region
      $region49: #{tpu_custom_call.1} parent=5 // pred_check
        %p689 = pneg %p688
      $region50: #{tpu_custom_call.1} parent=5 // pred_check_branch
        %691 = sbr.rel (%p689) target = $region52
      $region51: #{tpu_custom_call.1} parent=5 // pred_region
        %s692 = ssub.s32 %s15, 2
        // Predicated region
        $region53: #{tpu_custom_call.1} parent=51 // pred_check
          %p693 = pneg %p175
        $region54: #{tpu_custom_call.1} parent=51 // pred_check_branch
          %695 = sbr.rel (%p693) target = $region56
        $region55: #{tpu_custom_call.1} parent=51 // pred_region
          %s696 = sand.u32 %s160, 1
          %s697 = scalar_lea.sflag [#allocation3], %s696
          %s698 = sand.u32 %s160, 1
          %s699 = scalar_lea.vmem [#allocation2], %s698
          %700 = dma.done %s697, 16
        $region56: #{tpu_custom_call.1} parent=51 // pred_fallthru
          _
      $region52: #{tpu_custom_call.1} parent=5 // pred_fallthru
        _
    $region6: #{tpu_custom_call.1} parent=1 // loop_footer
      %s19 = sadd.s32 1, %s15
    $region7: #{tpu_custom_call.1} parent=1 // loop_footer_branch
      %14 = sbr.rel target = $region3
    $region8: #{tpu_custom_call.1} parent=1 // loop_exit
      _
    %701 = vsyncpa [#allocation3], 1
    %s702 = scalar_lea.sflag [#allocation3], 1
    %703 = vsyncpa %s702, 1

</llo_original>
